<compile_context>
chip_gen: v5e
topology: v5e:2x2
jax: 0.10.0
libtpu: 0.0.40
codegen_flags: <defaults>
</compile_context>

<pallas_src>
from functools import partial

import jax
import jax.numpy as jnp
from jax.experimental import pallas as pl
from jax.experimental.pallas import tpu as pltpu


# ---------------- Pallas kernel ----------------

def _psp_step_kernel(slot_ref, t_ref, s_ref, qrow_ref, wsum_ref,
                     qrow_out_ref, stats_ref):
    """Fused per-step kernel (single block, no grid tiling needed at this size).

    Inputs : target/source (B, D), the evicted ring-buffer row (selected by the
             scalar-prefetched slot index), the running window sum (1, D).
    Outputs: new ring-buffer row (aliased in-place write into the queue buffer) and
             a packed (2, D) stats block:
               row 0: updated running window sum of per-step column mean(t - s)
               row 1: per-column sum_b |t_bj - s_bj|  (for the masked L1)
    """
    del slot_ref  # consumed only by the index_maps
    # Cast in-kernel (free on the VPU; keeps HBM traffic at the source dtype).
    d = t_ref[...].astype(jnp.float32) - s_ref[...].astype(jnp.float32)
    inv_b = jnp.float32(1.0 / t_ref.shape[0])
    delta_row = jnp.sum(d, axis=0, keepdims=True) * inv_b        # (1, D) mean(t - s)
    col_abs = jnp.sum(jnp.abs(d), axis=0, keepdims=True)         # (1, D) sum |t - s|
    qrow_out_ref[0] = delta_row                                   # ring-buffer write
    stats_ref[0:1, :] = wsum_ref[...] + delta_row - qrow_ref[0]   # running window sum
    stats_ref[1:2, :] = col_abs


def psp_fused_step(slot, target, source, queue_buf, win_sum):
    """One pallas_call per training step.

    queue_buf is (W, 1, D) and is aliased to output 0, so only the single (1, 1, D)
    row addressed by the scalar-prefetched `slot` is DMA'd (read of the evicted row
    + write of the new row).  At (2, 3584) f32 everything else fits a single
    full-array VMEM block on v5e/v6e/v7x, so no grid over D is used.
    """
    B, D = target.shape
    W = queue_buf.shape[0]
    grid_spec = pltpu.PrefetchScalarGridSpec(
        num_scalar_prefetch=1,
        grid=(1,),
        in_specs=[
            pl.BlockSpec((B, D), lambda i, slot_ref: (0, 0)),                   # target
            pl.BlockSpec((B, D), lambda i, slot_ref: (0, 0)),                   # source
            pl.BlockSpec((1, 1, D), lambda i, slot_ref: (slot_ref[0], 0, 0)),   # evicted row
            pl.BlockSpec((1, D), lambda i, slot_ref: (0, 0)),                   # window sum
        ],
        out_specs=[
            pl.BlockSpec((1, 1, D), lambda i, slot_ref: (slot_ref[0], 0, 0)),   # new row
            pl.BlockSpec((2, D), lambda i, slot_ref: (0, 0)),                   # packed stats
        ],
    )
    new_queue, stats = pl.pallas_call(
        _psp_step_kernel,
        grid_spec=grid_spec,
        out_shape=(
            jax.ShapeDtypeStruct((W, 1, D), jnp.float32),   # updated ring buffer
            jax.ShapeDtypeStruct((2, D), jnp.float32),      # [new win_sum; col |t-s| sum]
        ),
        # Flat input indices are (slot=0, target=1, source=2, queue_buf=3, win_sum=4);
        # alias queue_buf -> output 0 so the ring buffer is updated in place and only
        # the touched row is written back.
        input_output_aliases={3: 0},
        compiler_params=pltpu.CompilerParams(
            dimension_semantics=("arbitrary",)),
    )(slot, target, source, queue_buf, win_sum)
    return new_queue, stats


# ---------------- Jitted functional forward ----------------

@partial(jax.jit,
         static_argnames=("num_keep_first", "psp_alpha", "window"),
         donate_argnums=(0,))
def _psp_forward(queue_buf, win_sum, step, trg_latents, src_latents, iters, *,
                 num_keep_first, psp_alpha, window):
    batch_size = trg_latents.shape[0]
    t = trg_latents.reshape(batch_size, -1)
    s = src_latents.reshape(batch_size, -1)
    if num_keep_first > 0:
        keep_num = num_keep_first * 512
        t = t[:, :keep_num]
        s = s[:, :keep_num]
    num_channel = t.shape[1]

    # Fused kernel: ring-buffer row update + running window-sum update + col |t-s| sums.
    slot = jnp.mod(step, window).astype(jnp.int32).reshape(1)
    new_queue, stats = psp_fused_step(slot, t, s, queue_buf, win_sum)
    new_win_sum = stats[0:1]
    col_abs_sum = stats[1]

    # delta_w = mean over the filled window of per-step (target - source) column means.
    queue_len = jnp.minimum(step + 1, window).astype(jnp.float32)
    delta_w = stats[0] / queue_len

    # dynamic_loss: keep the psp_alpha fraction of channels with smallest |delta_w|
    # (threshold compare instead of scatter -> pure VPU, fuses with the final dot).
    abs_dw = jnp.abs(delta_w)
    k = int(psp_alpha * num_channel)
    kth = -jax.lax.top_k(-abs_dw, k)[0][k - 1]    # k-th smallest |delta_w|
    # TODO(synk): exact ties at the k-th |delta_w| may select more than k channels;
    # torch.argsort's tie-break ordering is not reproduced bit-exactly.
    cond = (abs_dw <= kth).astype(jnp.float32)
    # F.l1_loss(cond*t, cond*s) == sum_j cond_j * sum_b |t_bj - s_bj| / (B * D)
    l1 = jnp.dot(cond, col_abs_sum) / jnp.float32(batch_size * num_channel)

    # Mirrors the PyTorch module verbatim: self.iter is never updated (stays 0), so
    # the denominator is (0 - window) = -50.  Flagged deliberately, kept for parity.
    module_iter = jnp.float32(0.0)
    regular_weight = jnp.maximum(jnp.float32(0.0),
                                 (iters - window) / (module_iter - window))
    loss = regular_weight * l1

    return loss, new_queue, new_win_sum, step + 1


# ---------------- Stateful module mirror ----------------

class PSPLossJAX:
    """Stateful mirror of the PyTorch PSPLoss module (psp_loss_type='dynamic')."""

    def __init__(self, num_keep_first=7, psp_alpha=0.6):
        self.num_keep_first = num_keep_first
        self.psp_loss_type = 'dynamic'
        self.delta_w_type = 'mean'
        self.sliding_window_size = 50
        self.psp_alpha = psp_alpha
        self.iter = 0  # never updated, exactly as in the reference module
        # Fixed-shape device-resident state (lazily created on first call):
        # ring buffer of per-step (target - source) column means, its running sum,
        # and the step counter (slot = step % W, queue_len = min(step + 1, W)).
        self.queue_buf = None
        self.win_sum = None
        self.step = None

    def _maybe_init_state(self, num_channel):
        if self.queue_buf is None:
            W = self.sliding_window_size
            self.queue_buf = jnp.zeros((W, 1, num_channel), jnp.float32)
            self.win_sum = jnp.zeros((1, num_channel), jnp.float32)
            self.step = jnp.int32(0)

    def forward(self, batch):
        trg = batch['inv_data']['trg_latents']
        src = batch['inv_data']['src_latents']
        iters = jnp.float32(batch['inv_data']['iters'])
        flat = 1
        for d in trg.shape[1:]:
            flat *= d
        if self.num_keep_first > 0:
            num_channel = min(self.num_keep_first * 512, flat)
        else:
            num_channel = flat
        self._maybe_init_state(num_channel)
        loss, self.queue_buf, self.win_sum, self.step = _psp_forward(
            self.queue_buf, self.win_sum, self.step, trg, src, iters,
            num_keep_first=self.num_keep_first,
            psp_alpha=self.psp_alpha,
            window=self.sliding_window_size)
        return loss

    __call__ = forward


# ---------------- Pure-JAX reference (no Pallas) for sanity checking ----------------

def _reference_losses(trg_list, src_list, iters_list, num_keep_first, psp_alpha,
                      window):
    queue, losses = [], []
    for trg, src, iters in zip(trg_list, src_list, iters_list):
        b = trg.shape[0]
        t = trg.reshape(b, -1).astype(jnp.float32)
        s = src.reshape(b, -1).astype(jnp.float32)
        if num_keep_first > 0:
            t = t[:, :num_keep_first * 512]
            s = s[:, :num_keep_first * 512]
        d = t - s
        if len(queue) >= window:
            queue.pop(0)
        queue.append(jnp.mean(d, axis=0))
        delta_w = jnp.mean(jnp.stack(queue), axis=0)
        abs_dw = jnp.abs(delta_w)
        nc = abs_dw.shape[0]
        k = int(psp_alpha * nc)
        kth = -jax.lax.top_k(-abs_dw, k)[0][k - 1]
        cond = (abs_dw <= kth).astype(jnp.float32)
        col_abs = jnp.sum(jnp.abs(d), axis=0)
        l1 = jnp.dot(cond, col_abs) / float(b * nc)
        rw = max(0.0, (float(iters) - window) / (0.0 - window))
        losses.append(rw * l1)
    return losses


# ---------------- Demo ----------------

if __name__ == "__main__":
    import numpy as np

    key = jax.random.PRNGKey(0)
    B = 2
    psp_loss = PSPLossJAX(num_keep_first=7, psp_alpha=0.6)

    # StyleGAN-like w+ latents: (B, 8, 512); flattened -> 4096, module keeps the first
    # num_keep_first*512 = 3584 features (a multiple of 128). Run a few steps to
    # exercise the ring buffer / running window sum.
    trgs, srcs, its, losses = [], [], [], []
    for i in range(3):
        key, k1, k2 = jax.random.split(key, 3)
        trg = jax.random.normal(k1, (B, 8, 512), dtype=jnp.float32)
        src = jax.random.normal(k2, (B, 8, 512), dtype=jnp.float32)
        batch = {'inv_data': {'trg_latents': trg,
                              'src_latents': src,
                              'iters': 10 + i}}
        losses.append(psp_loss.forward(batch))
        trgs.append(trg)
        srcs.append(src)
        its.append(10 + i)

    jax.block_until_ready(losses)

    ref = _reference_losses(trgs, srcs, its, 7, 0.6, psp_loss.sliding_window_size)
    np.testing.assert_allclose(np.asarray(losses), np.asarray(jnp.stack(ref)),
                               rtol=1e-4, atol=1e-6)
    print("KERNEL_OK")
</pallas_src>

<mosaic_0001>
module attributes {stable_mosaic.version = 11 : i64} {
  func.func @_psp_step_kernel(%arg0: i32, %arg1: memref<1xi32, #tpu.memory_space<smem>>, %arg2: memref<2x3584xf32, #tpu.memory_space<vmem>>, %arg3: memref<2x3584xf32, #tpu.memory_space<vmem>>, %arg4: memref<1x1x3584xf32, #tpu.memory_space<vmem>>, %arg5: memref<1x3584xf32, #tpu.memory_space<vmem>>, %arg6: memref<1x1x3584xf32, #tpu.memory_space<vmem>>, %arg7: memref<2x3584xf32, #tpu.memory_space<vmem>>) attributes {dimension_semantics = [#tpu.dimension_semantics<arbitrary>], iteration_bounds = array<i64: 1>, scalar_prefetch = 1 : i64, scratch_operands = 0 : i64, tpu.core_type = #tpu.core_type<tc>, window_params = [{pipeline_mode = #tpu.pipeline_mode<synchronous>, transform_indices = @transform_0, window_bounds = array<i64: 2, 3584>}, {pipeline_mode = #tpu.pipeline_mode<synchronous>, transform_indices = @transform_1, window_bounds = array<i64: 2, 3584>}, {transform_indices = @transform_2, window_bounds = array<i64: 1, 1, 3584>}, {pipeline_mode = #tpu.pipeline_mode<synchronous>, transform_indices = @transform_3, window_bounds = array<i64: 1, 3584>}, {transform_indices = @transform_4, window_bounds = array<i64: 1, 1, 3584>}, {pipeline_mode = #tpu.pipeline_mode<synchronous>, transform_indices = @transform_5, window_bounds = array<i64: 2, 3584>}]} {
    %c0 = arith.constant 0 : index
    %c0_0 = arith.constant 0 : index
    %0 = vector.load %arg2[%c0, %c0_0] : memref<2x3584xf32, #tpu.memory_space<vmem>>, vector<2x3584xf32>
    %c0_1 = arith.constant 0 : index
    %c0_2 = arith.constant 0 : index
    %1 = vector.load %arg3[%c0_1, %c0_2] : memref<2x3584xf32, #tpu.memory_space<vmem>>, vector<2x3584xf32>
    %2 = arith.subf %0, %1 : vector<2x3584xf32>
    %cst = arith.constant dense<0.000000e+00> : vector<3584xf32>
    %3 = vector.multi_reduction <add>, %2, %cst [0] : vector<2x3584xf32> to vector<3584xf32>
    %4 = vector.shape_cast %3 : vector<3584xf32> to vector<1x3584xf32>
    %cst_3 = arith.constant 5.000000e-01 : f32
    %5 = vector.broadcast %cst_3 : f32 to vector<1x3584xf32>
    %6 = arith.mulf %4, %5 : vector<1x3584xf32>
    %7 = math.absf %2 : vector<2x3584xf32>
    %cst_4 = arith.constant dense<0.000000e+00> : vector<3584xf32>
    %8 = vector.multi_reduction <add>, %7, %cst_4 [0] : vector<2x3584xf32> to vector<3584xf32>
    %9 = vector.shape_cast %8 : vector<3584xf32> to vector<1x3584xf32>
    %c0_5 = arith.constant 0 : index
    %c0_6 = arith.constant 0 : index
    %c0_7 = arith.constant 0 : index
    %10 = vector.load %arg6[%c0_5, %c0_6, %c0_7] : memref<1x1x3584xf32, #tpu.memory_space<vmem>>, vector<1x1x3584xf32>
    %11 = vector.shape_cast %10 : vector<1x1x3584xf32> to vector<1x3584xf32>
    %12 = vector.shape_cast %6 : vector<1x3584xf32> to vector<1x1x3584xf32>
    tpu.vector_store %arg6[%c0_5, %c0_6, %c0_7], %12 {strides = array<i32>} : memref<1x1x3584xf32, #tpu.memory_space<vmem>>, vector<1x1x3584xf32>,
    %c0_8 = arith.constant 0 : index
    %c0_9 = arith.constant 0 : index
    %13 = vector.load %arg5[%c0_8, %c0_9] : memref<1x3584xf32, #tpu.memory_space<vmem>>, vector<1x3584xf32>
    %14 = arith.addf %13, %6 : vector<1x3584xf32>
    %c0_10 = arith.constant 0 : index
    %c0_11 = arith.constant 0 : index
    %c0_12 = arith.constant 0 : index
    %15 = vector.load %arg4[%c0_10, %c0_11, %c0_12] : memref<1x1x3584xf32, #tpu.memory_space<vmem>>, vector<1x1x3584xf32>
    %16 = vector.shape_cast %15 : vector<1x1x3584xf32> to vector<1x3584xf32>
    %17 = arith.subf %14, %16 : vector<1x3584xf32>
    %c0_13 = arith.constant 0 : index
    %c0_14 = arith.constant 0 : index
    %18 = vector.load %arg7[%c0_13, %c0_14] : memref<2x3584xf32, #tpu.memory_space<vmem>>, vector<1x3584xf32>
    tpu.vector_store %arg7[%c0_13, %c0_14], %17 {strides = array<i32>} : memref<2x3584xf32, #tpu.memory_space<vmem>>, vector<1x3584xf32>,
    %c1 = arith.constant 1 : index
    %c0_15 = arith.constant 0 : index
    %19 = vector.load %arg7[%c1, %c0_15] : memref<2x3584xf32, #tpu.memory_space<vmem>>, vector<1x3584xf32>
    tpu.vector_store %arg7[%c1, %c0_15], %9 {strides = array<i32>} : memref<2x3584xf32, #tpu.memory_space<vmem>>, vector<1x3584xf32>,
    return
  }
  func.func @transform_0(%arg0: i32, %arg1: memref<1xi32, #tpu.memory_space<smem>>) -> (i32, i32) {
    %c0_i32 = arith.constant 0 : i32
    %c0_i32_0 = arith.constant 0 : i32
    %c0_i32_1 = arith.constant 0 : i32
    return %c0_i32, %c0_i32_0 : i32, i32
  }
  func.func @transform_1(%arg0: i32, %arg1: memref<1xi32, #tpu.memory_space<smem>>) -> (i32, i32) {
    %c0_i32 = arith.constant 0 : i32
    %c0_i32_0 = arith.constant 0 : i32
    %c0_i32_1 = arith.constant 0 : i32
    return %c0_i32, %c0_i32_0 : i32, i32
  }
  func.func @transform_2(%arg0: i32, %arg1: memref<1xi32, #tpu.memory_space<smem>>) -> (i32, i32, i32) {
    %c0 = arith.constant 0 : index
    %0 = memref.load %arg1[%c0] : memref<1xi32, #tpu.memory_space<smem>>
    %c0_i32 = arith.constant 0 : i32
    %c0_i32_0 = arith.constant 0 : i32
    %c0_i32_1 = arith.constant 0 : i32
    return %0, %c0_i32, %c0_i32_0 : i32, i32, i32
  }
  func.func @transform_3(%arg0: i32, %arg1: memref<1xi32, #tpu.memory_space<smem>>) -> (i32, i32) {
    %c0_i32 = arith.constant 0 : i32
    %c0_i32_0 = arith.constant 0 : i32
    %c0_i32_1 = arith.constant 0 : i32
    return %c0_i32, %c0_i32_0 : i32, i32
  }
  func.func @transform_4(%arg0: i32, %arg1: memref<1xi32, #tpu.memory_space<smem>>) -> (i32, i32, i32) {
    %c0 = arith.constant 0 : index
    %0 = memref.load %arg1[%c0] : memref<1xi32, #tpu.memory_space<smem>>
    %c0_i32 = arith.constant 0 : i32
    %c0_i32_0 = arith.constant 0 : i32
    %c0_i32_1 = arith.constant 0 : i32
    return %0, %c0_i32, %c0_i32_0 : i32, i32, i32
  }
  func.func @transform_5(%arg0: i32, %arg1: memref<1xi32, #tpu.memory_space<smem>>) -> (i32, i32) {
    %c0_i32 = arith.constant 0 : i32
    %c0_i32_0 = arith.constant 0 : i32
    %c0_i32_1 = arith.constant 0 : i32
    return %c0_i32, %c0_i32_0 : i32, i32
  }
}

</mosaic_0001>

<llo_original>
// kernel: _psp_forward.1
$region0: #{_psp_forward.1}
  #allocation0 [shape = 'u32[]', space=smem, size = 0x4, offset = 0x4, fixed_abs, tag = 'smem constant byte address 0x4 - core index']
  #allocation1 [shape = 'u32[72,128]{1,0:T(1,128)}', space=vmem, size = 0x9000, scoped, tag = 'internal scratch']
  #allocation2 [shape = 's32[1]{0}', space=sflag, size = 0x4, scoped, tag = 'scoped memory for _psp_forward.1']
  #allocation3 [shape = 's32[1]{0:T(128)S(6)}', space=smem, size = 0x200, scoped, tag = 'prefetched SMEM operand 0']
  %s0 = inlined_call_operand.<no memory space> [shape: s32[1], index: 0, kind: input, shape index: {}]
  %s1 = inlined_call_operand.vmem [shape: f32[2,3584], index: 1, kind: input, shape index: {}]
  %s2 = inlined_call_operand.vmem [shape: f32[2,3584], index: 2, kind: input, shape index: {}]
  %s3 = inlined_call_operand.hbm [shape: f32[50,1,3584], index: 3, kind: input, shape index: {}, may-alias: {3,5}]
  %s4 = inlined_call_operand.vmem [shape: f32[1,3584], index: 4, kind: input, shape index: {}]
  %s5 = inlined_call_operand.hbm [shape: f32[50,1,3584], index: 5, kind: output, shape index: {0}, may-alias: {3,5}]
  %s6 = inlined_call_operand.vmem [shape: f32[2,3584], index: 6, kind: output, shape index: {1}]
  %7 = xla_tuple %s5, %s6
  %s8 = sld [smem:[#allocation0]]
  $region38: #{_psp_forward.1} parent=0
    _
  %s10 = ssub.s32 1, %s8
  %s11 = scalar_select 0, %s10, %s8
  %12 = sst [smem:[#allocation3]] %s0
  $region1: #{_psp_forward.1} parent=0
    #allocation4 [shape = 'u8[14336]{0}', space=vmem, size = 0x3800, scoped, tag = 'input window, operand 3, single buffered']
    #allocation5 [shape = 's32[1]{0}', space=sflag, size = 0x4, scoped, tag = 'scoped memory for _psp_forward.1']
    #allocation6 [shape = 's32[1]{0}', space=sflag, size = 0x4, scoped, tag = 'scoped memory for _psp_forward.1']
    #allocation7 [shape = 'u8[14336]{0}', space=vmem, size = 0x3800, scoped, tag = 'output window, operand 0, single buffered']
    %13 = vsyncpa [#allocation5], 0
    %14 = vsyncpa [#allocation6], 0
    // Predicated region
    $region2: #{_psp_forward.1} parent=1 // pred_check
      _
    $region3: #{_psp_forward.1} parent=1 // pred_check_branch
      %16 = sbr.rel (0) target = $region5
    $region4: #{_psp_forward.1} parent=1 // pred_region
      _
    $region5: #{_psp_forward.1} parent=1 // pred_fallthru
      _
    // Predicated region
    $region6: #{_psp_forward.1} parent=1 // pred_check
      _
    $region7: #{_psp_forward.1} parent=1 // pred_check_branch
      %18 = sbr.rel (0) target = $region9
    $region8: #{_psp_forward.1} parent=1 // pred_region
      _
    $region9: #{_psp_forward.1} parent=1 // pred_fallthru
      _
    // Predicated region
    $region10: #{_psp_forward.1} parent=1 // pred_check
      _
    $region11: #{_psp_forward.1} parent=1 // pred_check_branch
      %20 = sbr.rel (0) target = $region13
    $region12: #{_psp_forward.1} parent=1 // pred_region
      %s21 = sld [smem:[#allocation3]]
      %23 = vsyncadd [#allocation5], 0
      %s24 = smul.addr %s21, 28
      %s25 = scalar_lea.hbm %s3, %s24
      %s27 = sshll.u32 %s25, 4
      %s28 = int_to_ptr.hbm [resolvable:$true] %s27
      %s29 = sshll.u32 [#allocation4], 4
      %s30 = int_to_ptr.vmem [resolvable:$true] %s29
      %32 = dma.hbm_to_vmem [thread:$0]  %s28, 448, %s30, [#allocation5]
    $region13: #{_psp_forward.1} parent=1 // pred_fallthru
      _
    // Predicated region
    $region14: #{_psp_forward.1} parent=1 // pred_check
      _
    $region15: #{_psp_forward.1} parent=1 // pred_check_branch
      %34 = sbr.rel (0) target = $region17
    $region16: #{_psp_forward.1} parent=1 // pred_region
      _
    $region17: #{_psp_forward.1} parent=1 // pred_fallthru
      _
    // Predicated region
    $region18: #{_psp_forward.1} parent=1 // pred_check
      _
    $region19: #{_psp_forward.1} parent=1 // pred_check_branch
      %36 = sbr.rel (0) target = $region21
    $region20: #{_psp_forward.1} parent=1 // pred_region
      %38 = dma.done [#allocation5], 448
    $region21: #{_psp_forward.1} parent=1 // pred_fallthru
      _
    %s39 = sld [smem:[#allocation3]]
    %s40 = sld [smem:[#allocation3]]
    %v41 = vld [vmem:[%s1] sm:$0xff]
    %v42 = vld [vmem:[%s1 + $0x8] sm:$0xff]
    %v43 = vld [vmem:[%s1 + $0x10] sm:$0xff]
    %v44 = vld [vmem:[%s1 + $0x18] sm:$0xff]
    %v45 = vld [vmem:[%s1 + $0x20] sm:$0xff]
    %v46 = vld [vmem:[%s1 + $0x28] sm:$0xff]
    %v47 = vld [vmem:[%s1 + $0x30] sm:$0xff]
    %v48 = vld [vmem:[%s2] sm:$0xff]
    %v49 = vld [vmem:[%s2 + $0x8] sm:$0xff]
    %v50 = vld [vmem:[%s2 + $0x10] sm:$0xff]
    %v51 = vld [vmem:[%s2 + $0x18] sm:$0xff]
    %v52 = vld [vmem:[%s2 + $0x20] sm:$0xff]
    %v53 = vld [vmem:[%s2 + $0x28] sm:$0xff]
    %v54 = vld [vmem:[%s2 + $0x30] sm:$0xff]
    %v55 = vsub.f32 %v41, %v48
    %v56 = vsub.f32 %v42, %v49
    %v57 = vsub.f32 %v43, %v50
    %v58 = vsub.f32 %v44, %v51
    %v59 = vsub.f32 %v45, %v52
    %v60 = vsub.f32 %v46, %v53
    %v61 = vsub.f32 %v47, %v54
    %69 = vst [vmem:[#allocation1] ss:$4 sm:$0xff] %v55
    %s70 = scalar_lea.vmem [#allocation1], 32
    %71 = vst [vmem:[%s70] ss:$4 sm:$0xff] %v56
    %v72 = vld.sshfl [vmem:[#allocation1] sm:$0xff pattern:$0x73625140]
    %v73 = vld.sshfl [vmem:[#allocation1 + $0x8] sm:$0xff pattern:$0x73625140]
    %v74 = vld.sshfl [vmem:[#allocation1 + $0x10] sm:$0xff pattern:$0x73625140]
    %v75 = vld.sshfl [vmem:[#allocation1 + $0x18] sm:$0xff pattern:$0x73625140]
    %v76 = vld.sshfl [vmem:[#allocation1 + $0x20] sm:$0xff pattern:$0x73625140]
    %v77 = vld.sshfl [vmem:[#allocation1 + $0x28] sm:$0xff pattern:$0x73625140]
    %v78 = vld.sshfl [vmem:[#allocation1 + $0x30] sm:$0xff pattern:$0x73625140]
    %v79 = vld.sshfl [vmem:[#allocation1 + $0x38] sm:$0xff pattern:$0x73625140]
    %80 = vst [vmem:[#allocation1] ss:$4 sm:$0xff] %v57
    %81 = vst [vmem:[%s70] ss:$4 sm:$0xff] %v58
    %v82 = vld.sshfl [vmem:[#allocation1] sm:$0xff pattern:$0x73625140]
    %v83 = vld.sshfl [vmem:[#allocation1 + $0x8] sm:$0xff pattern:$0x73625140]
    %v84 = vld.sshfl [vmem:[#allocation1 + $0x10] sm:$0xff pattern:$0x73625140]
    %v85 = vld.sshfl [vmem:[#allocation1 + $0x18] sm:$0xff pattern:$0x73625140]
    %v86 = vld.sshfl [vmem:[#allocation1 + $0x20] sm:$0xff pattern:$0x73625140]
    %v87 = vld.sshfl [vmem:[#allocation1 + $0x28] sm:$0xff pattern:$0x73625140]
    %v88 = vld.sshfl [vmem:[#allocation1 + $0x30] sm:$0xff pattern:$0x73625140]
    %v89 = vld.sshfl [vmem:[#allocation1 + $0x38] sm:$0xff pattern:$0x73625140]
    %90 = vst [vmem:[#allocation1] ss:$4 sm:$0xff] %v59
    %91 = vst [vmem:[%s70] ss:$4 sm:$0xff] %v60
    %v92 = vld.sshfl [vmem:[#allocation1] sm:$0xff pattern:$0x73625140]
    %v93 = vld.sshfl [vmem:[#allocation1 + $0x8] sm:$0xff pattern:$0x73625140]
    %v94 = vld.sshfl [vmem:[#allocation1 + $0x10] sm:$0xff pattern:$0x73625140]
    %v95 = vld.sshfl [vmem:[#allocation1 + $0x18] sm:$0xff pattern:$0x73625140]
    %v96 = vld.sshfl [vmem:[#allocation1 + $0x20] sm:$0xff pattern:$0x73625140]
    %v97 = vld.sshfl [vmem:[#allocation1 + $0x28] sm:$0xff pattern:$0x73625140]
    %v98 = vld.sshfl [vmem:[#allocation1 + $0x30] sm:$0xff pattern:$0x73625140]
    %v99 = vld.sshfl [vmem:[#allocation1 + $0x38] sm:$0xff pattern:$0x73625140]
    %100 = vst [vmem:[#allocation1] ss:$4 sm:$0xff] %v61
    %v101 = vld.sshfl [vmem:[#allocation1] sm:$0xff pattern:$0x73625140]
    %v102 = vld.sshfl [vmem:[#allocation1 + $0x8] sm:$0xff pattern:$0x73625140]
    %v103 = vld.sshfl [vmem:[#allocation1 + $0x10] sm:$0xff pattern:$0x73625140]
    %v104 = vld.sshfl [vmem:[#allocation1 + $0x18] sm:$0xff pattern:$0x73625140]
    %vm133 = vcmask 1041408
    %v134 = vsel %vm133, %v72, 0.0
    %v135 = vrot.slane %v134, 4
    %v136 = vadd.f32 %v134, %v135
    %v137 = vrot.slane %v136, 2
    %v138 = vadd.f32 %v136, %v137
    %v139 = vrot.slane %v138, 1
    %v140 = vadd.f32 %v138, %v139
    %v141 = vsel %vm133, %v73, 0.0
    %v142 = vrot.slane %v141, 4
    %v143 = vadd.f32 %v141, %v142
    %v144 = vrot.slane %v143, 2
    %v145 = vadd.f32 %v143, %v144
    %v146 = vrot.slane %v145, 1
    %v147 = vadd.f32 %v145, %v146
    %v148 = vsel %vm133, %v74, 0.0
    %v149 = vrot.slane %v148, 4
    %v150 = vadd.f32 %v148, %v149
    %v151 = vrot.slane %v150, 2
    %v152 = vadd.f32 %v150, %v151
    %v153 = vrot.slane %v152, 1
    %v154 = vadd.f32 %v152, %v153
    %v155 = vsel %vm133, %v75, 0.0
    %v156 = vrot.slane %v155, 4
    %v157 = vadd.f32 %v155, %v156
    %v158 = vrot.slane %v157, 2
    %v159 = vadd.f32 %v157, %v158
    %v160 = vrot.slane %v159, 1
    %v161 = vadd.f32 %v159, %v160
    %v162 = vsel %vm133, %v76, 0.0
    %v163 = vrot.slane %v162, 4
    %v164 = vadd.f32 %v162, %v163
    %v165 = vrot.slane %v164, 2
    %v166 = vadd.f32 %v164, %v165
    %v167 = vrot.slane %v166, 1
    %v168 = vadd.f32 %v166, %v167
    %v169 = vsel %vm133, %v77, 0.0
    %v170 = vrot.slane %v169, 4
    %v171 = vadd.f32 %v169, %v170
    %v172 = vrot.slane %v171, 2
    %v173 = vadd.f32 %v171, %v172
    %v174 = vrot.slane %v173, 1
    %v175 = vadd.f32 %v173, %v174
    %v176 = vsel %vm133, %v78, 0.0
    %v177 = vrot.slane %v176, 4
    %v178 = vadd.f32 %v176, %v177
    %v179 = vrot.slane %v178, 2
    %v180 = vadd.f32 %v178, %v179
    %v181 = vrot.slane %v180, 1
    %v182 = vadd.f32 %v180, %v181
    %v183 = vsel %vm133, %v79, 0.0
    %v184 = vrot.slane %v183, 4
    %v185 = vadd.f32 %v183, %v184
    %v186 = vrot.slane %v185, 2
    %v187 = vadd.f32 %v185, %v186
    %v188 = vrot.slane %v187, 1
    %v189 = vadd.f32 %v187, %v188
    %v190 = vsel %vm133, %v82, 0.0
    %v191 = vrot.slane %v190, 4
    %v192 = vadd.f32 %v190, %v191
    %v193 = vrot.slane %v192, 2
    %v194 = vadd.f32 %v192, %v193
    %v195 = vrot.slane %v194, 1
    %v196 = vadd.f32 %v194, %v195
    %v197 = vsel %vm133, %v83, 0.0
    %v198 = vrot.slane %v197, 4
    %v199 = vadd.f32 %v197, %v198
    %v200 = vrot.slane %v199, 2
    %v201 = vadd.f32 %v199, %v200
    %v202 = vrot.slane %v201, 1
    %v203 = vadd.f32 %v201, %v202
    %v204 = vsel %vm133, %v84, 0.0
    %v205 = vrot.slane %v204, 4
    %v206 = vadd.f32 %v204, %v205
    %v207 = vrot.slane %v206, 2
    %v208 = vadd.f32 %v206, %v207
    %v209 = vrot.slane %v208, 1
    %v210 = vadd.f32 %v208, %v209
    %v211 = vsel %vm133, %v85, 0.0
    %v212 = vrot.slane %v211, 4
    %v213 = vadd.f32 %v211, %v212
    %v214 = vrot.slane %v213, 2
    %v215 = vadd.f32 %v213, %v214
    %v216 = vrot.slane %v215, 1
    %v217 = vadd.f32 %v215, %v216
    %v218 = vsel %vm133, %v86, 0.0
    %v219 = vrot.slane %v218, 4
    %v220 = vadd.f32 %v218, %v219
    %v221 = vrot.slane %v220, 2
    %v222 = vadd.f32 %v220, %v221
    %v223 = vrot.slane %v222, 1
    %v224 = vadd.f32 %v222, %v223
    %v225 = vsel %vm133, %v87, 0.0
    %v226 = vrot.slane %v225, 4
    %v227 = vadd.f32 %v225, %v226
    %v228 = vrot.slane %v227, 2
    %v229 = vadd.f32 %v227, %v228
    %v230 = vrot.slane %v229, 1
    %v231 = vadd.f32 %v229, %v230
    %v232 = vsel %vm133, %v88, 0.0
    %v233 = vrot.slane %v232, 4
    %v234 = vadd.f32 %v232, %v233
    %v235 = vrot.slane %v234, 2
    %v236 = vadd.f32 %v234, %v235
    %v237 = vrot.slane %v236, 1
    %v238 = vadd.f32 %v236, %v237
    %v239 = vsel %vm133, %v89, 0.0
    %v240 = vrot.slane %v239, 4
    %v241 = vadd.f32 %v239, %v240
    %v242 = vrot.slane %v241, 2
    %v243 = vadd.f32 %v241, %v242
    %v244 = vrot.slane %v243, 1
    %v245 = vadd.f32 %v243, %v244
    %v246 = vsel %vm133, %v92, 0.0
    %v247 = vrot.slane %v246, 4
    %v248 = vadd.f32 %v246, %v247
    %v249 = vrot.slane %v248, 2
    %v250 = vadd.f32 %v248, %v249
    %v251 = vrot.slane %v250, 1
    %v252 = vadd.f32 %v250, %v251
    %v253 = vsel %vm133, %v93, 0.0
    %v254 = vrot.slane %v253, 4
    %v255 = vadd.f32 %v253, %v254
    %v256 = vrot.slane %v255, 2
    %v257 = vadd.f32 %v255, %v256
    %v258 = vrot.slane %v257, 1
    %v259 = vadd.f32 %v257, %v258
    %v260 = vsel %vm133, %v94, 0.0
    %v261 = vrot.slane %v260, 4
    %v262 = vadd.f32 %v260, %v261
    %v263 = vrot.slane %v262, 2
    %v264 = vadd.f32 %v262, %v263
    %v265 = vrot.slane %v264, 1
    %v266 = vadd.f32 %v264, %v265
    %v267 = vsel %vm133, %v95, 0.0
    %v268 = vrot.slane %v267, 4
    %v269 = vadd.f32 %v267, %v268
    %v270 = vrot.slane %v269, 2
    %v271 = vadd.f32 %v269, %v270
    %v272 = vrot.slane %v271, 1
    %v273 = vadd.f32 %v271, %v272
    %v274 = vsel %vm133, %v96, 0.0
    %v275 = vrot.slane %v274, 4
    %v276 = vadd.f32 %v274, %v275
    %v277 = vrot.slane %v276, 2
    %v278 = vadd.f32 %v276, %v277
    %v279 = vrot.slane %v278, 1
    %v280 = vadd.f32 %v278, %v279
    %v281 = vsel %vm133, %v97, 0.0
    %v282 = vrot.slane %v281, 4
    %v283 = vadd.f32 %v281, %v282
    %v284 = vrot.slane %v283, 2
    %v285 = vadd.f32 %v283, %v284
    %v286 = vrot.slane %v285, 1
    %v287 = vadd.f32 %v285, %v286
    %v288 = vsel %vm133, %v98, 0.0
    %v289 = vrot.slane %v288, 4
    %v290 = vadd.f32 %v288, %v289
    %v291 = vrot.slane %v290, 2
    %v292 = vadd.f32 %v290, %v291
    %v293 = vrot.slane %v292, 1
    %v294 = vadd.f32 %v292, %v293
    %v295 = vsel %vm133, %v99, 0.0
    %v296 = vrot.slane %v295, 4
    %v297 = vadd.f32 %v295, %v296
    %v298 = vrot.slane %v297, 2
    %v299 = vadd.f32 %v297, %v298
    %v300 = vrot.slane %v299, 1
    %v301 = vadd.f32 %v299, %v300
    %v302 = vsel %vm133, %v101, 0.0
    %v303 = vrot.slane %v302, 4
    %v304 = vadd.f32 %v302, %v303
    %v305 = vrot.slane %v304, 2
    %v306 = vadd.f32 %v304, %v305
    %v307 = vrot.slane %v306, 1
    %v308 = vadd.f32 %v306, %v307
    %v309 = vsel %vm133, %v102, 0.0
    %v310 = vrot.slane %v309, 4
    %v311 = vadd.f32 %v309, %v310
    %v312 = vrot.slane %v311, 2
    %v313 = vadd.f32 %v311, %v312
    %v314 = vrot.slane %v313, 1
    %v315 = vadd.f32 %v313, %v314
    %v316 = vsel %vm133, %v103, 0.0
    %v317 = vrot.slane %v316, 4
    %v318 = vadd.f32 %v316, %v317
    %v319 = vrot.slane %v318, 2
    %v320 = vadd.f32 %v318, %v319
    %v321 = vrot.slane %v320, 1
    %v322 = vadd.f32 %v320, %v321
    %v323 = vsel %vm133, %v104, 0.0
    %v324 = vrot.slane %v323, 4
    %v325 = vadd.f32 %v323, %v324
    %v326 = vrot.slane %v325, 2
    %v327 = vadd.f32 %v325, %v326
    %v328 = vrot.slane %v327, 1
    %v329 = vadd.f32 %v327, %v328
    %v330 = vmul.f32 %v140, 0.5
    %v331 = vmul.f32 %v147, 0.5
    %v332 = vmul.f32 %v154, 0.5
    %v333 = vmul.f32 %v161, 0.5
    %v334 = vmul.f32 %v168, 0.5
    %v335 = vmul.f32 %v175, 0.5
    %v336 = vmul.f32 %v182, 0.5
    %v337 = vmul.f32 %v189, 0.5
    %v338 = vmul.f32 %v196, 0.5
    %v339 = vmul.f32 %v203, 0.5
    %v340 = vmul.f32 %v210, 0.5
    %v341 = vmul.f32 %v217, 0.5
    %v342 = vmul.f32 %v224, 0.5
    %v343 = vmul.f32 %v231, 0.5
    %v344 = vmul.f32 %v238, 0.5
    %v345 = vmul.f32 %v245, 0.5
    %v346 = vmul.f32 %v252, 0.5
    %v347 = vmul.f32 %v259, 0.5
    %v348 = vmul.f32 %v266, 0.5
    %v349 = vmul.f32 %v273, 0.5
    %v350 = vmul.f32 %v280, 0.5
    %v351 = vmul.f32 %v287, 0.5
    %v352 = vmul.f32 %v294, 0.5
    %v353 = vmul.f32 %v301, 0.5
    %v354 = vmul.f32 %v308, 0.5
    %v355 = vmul.f32 %v315, 0.5
    %v356 = vmul.f32 %v322, 0.5
    %v357 = vmul.f32 %v329, 0.5
    %v358 = vand.u32 2147483647, %v55
    %v359 = vand.u32 2147483647, %v56
    %v360 = vand.u32 2147483647, %v57
    %v361 = vand.u32 2147483647, %v58
    %v362 = vand.u32 2147483647, %v59
    %v363 = vand.u32 2147483647, %v60
    %v364 = vand.u32 2147483647, %v61
    %372 = vst [vmem:[#allocation1] ss:$4 sm:$0xff] %v358
    %s373 = scalar_lea.vmem [#allocation1], 32
    %374 = vst [vmem:[%s373] ss:$4 sm:$0xff] %v359
    %v375 = vld.sshfl [vmem:[#allocation1] sm:$0xff pattern:$0x73625140]
    %v376 = vld.sshfl [vmem:[#allocation1 + $0x8] sm:$0xff pattern:$0x73625140]
    %v377 = vld.sshfl [vmem:[#allocation1 + $0x10] sm:$0xff pattern:$0x73625140]
    %v378 = vld.sshfl [vmem:[#allocation1 + $0x18] sm:$0xff pattern:$0x73625140]
    %v379 = vld.sshfl [vmem:[#allocation1 + $0x20] sm:$0xff pattern:$0x73625140]
    %v380 = vld.sshfl [vmem:[#allocation1 + $0x28] sm:$0xff pattern:$0x73625140]
    %v381 = vld.sshfl [vmem:[#allocation1 + $0x30] sm:$0xff pattern:$0x73625140]
    %v382 = vld.sshfl [vmem:[#allocation1 + $0x38] sm:$0xff pattern:$0x73625140]
    %383 = vst [vmem:[#allocation1] ss:$4 sm:$0xff] %v360
    %384 = vst [vmem:[%s373] ss:$4 sm:$0xff] %v361
    %v385 = vld.sshfl [vmem:[#allocation1] sm:$0xff pattern:$0x73625140]
    %v386 = vld.sshfl [vmem:[#allocation1 + $0x8] sm:$0xff pattern:$0x73625140]
    %v387 = vld.sshfl [vmem:[#allocation1 + $0x10] sm:$0xff pattern:$0x73625140]
    %v388 = vld.sshfl [vmem:[#allocation1 + $0x18] sm:$0xff pattern:$0x73625140]
    %v389 = vld.sshfl [vmem:[#allocation1 + $0x20] sm:$0xff pattern:$0x73625140]
    %v390 = vld.sshfl [vmem:[#allocation1 + $0x28] sm:$0xff pattern:$0x73625140]
    %v391 = vld.sshfl [vmem:[#allocation1 + $0x30] sm:$0xff pattern:$0x73625140]
    %v392 = vld.sshfl [vmem:[#allocation1 + $0x38] sm:$0xff pattern:$0x73625140]
    %393 = vst [vmem:[#allocation1] ss:$4 sm:$0xff] %v362
    %394 = vst [vmem:[%s373] ss:$4 sm:$0xff] %v363
    %v395 = vld.sshfl [vmem:[#allocation1] sm:$0xff pattern:$0x73625140]
    %v396 = vld.sshfl [vmem:[#allocation1 + $0x8] sm:$0xff pattern:$0x73625140]
    %v397 = vld.sshfl [vmem:[#allocation1 + $0x10] sm:$0xff pattern:$0x73625140]
    %v398 = vld.sshfl [vmem:[#allocation1 + $0x18] sm:$0xff pattern:$0x73625140]
    %v399 = vld.sshfl [vmem:[#allocation1 + $0x20] sm:$0xff pattern:$0x73625140]
    %v400 = vld.sshfl [vmem:[#allocation1 + $0x28] sm:$0xff pattern:$0x73625140]
    %v401 = vld.sshfl [vmem:[#allocation1 + $0x30] sm:$0xff pattern:$0x73625140]
    %v402 = vld.sshfl [vmem:[#allocation1 + $0x38] sm:$0xff pattern:$0x73625140]
    %403 = vst [vmem:[#allocation1] ss:$4 sm:$0xff] %v364
    %v404 = vld.sshfl [vmem:[#allocation1] sm:$0xff pattern:$0x73625140]
    %v405 = vld.sshfl [vmem:[#allocation1 + $0x8] sm:$0xff pattern:$0x73625140]
    %v406 = vld.sshfl [vmem:[#allocation1 + $0x10] sm:$0xff pattern:$0x73625140]
    %v407 = vld.sshfl [vmem:[#allocation1 + $0x18] sm:$0xff pattern:$0x73625140]
    %v436 = vsel %vm133, %v375, 0.0
    %v437 = vrot.slane %v436, 4
    %v438 = vadd.f32 %v436, %v437
    %v439 = vrot.slane %v438, 2
    %v440 = vadd.f32 %v438, %v439
    %v441 = vrot.slane %v440, 1
    %v442 = vadd.f32 %v440, %v441
    %v443 = vsel %vm133, %v376, 0.0
    %v444 = vrot.slane %v443, 4
    %v445 = vadd.f32 %v443, %v444
    %v446 = vrot.slane %v445, 2
    %v447 = vadd.f32 %v445, %v446
    %v448 = vrot.slane %v447, 1
    %v449 = vadd.f32 %v447, %v448
    %v450 = vsel %vm133, %v377, 0.0
    %v451 = vrot.slane %v450, 4
    %v452 = vadd.f32 %v450, %v451
    %v453 = vrot.slane %v452, 2
    %v454 = vadd.f32 %v452, %v453
    %v455 = vrot.slane %v454, 1
    %v456 = vadd.f32 %v454, %v455
    %v457 = vsel %vm133, %v378, 0.0
    %v458 = vrot.slane %v457, 4
    %v459 = vadd.f32 %v457, %v458
    %v460 = vrot.slane %v459, 2
    %v461 = vadd.f32 %v459, %v460
    %v462 = vrot.slane %v461, 1
    %v463 = vadd.f32 %v461, %v462
    %v464 = vsel %vm133, %v379, 0.0
    %v465 = vrot.slane %v464, 4
    %v466 = vadd.f32 %v464, %v465
    %v467 = vrot.slane %v466, 2
    %v468 = vadd.f32 %v466, %v467
    %v469 = vrot.slane %v468, 1
    %v470 = vadd.f32 %v468, %v469
    %v471 = vsel %vm133, %v380, 0.0
    %v472 = vrot.slane %v471, 4
    %v473 = vadd.f32 %v471, %v472
    %v474 = vrot.slane %v473, 2
    %v475 = vadd.f32 %v473, %v474
    %v476 = vrot.slane %v475, 1
    %v477 = vadd.f32 %v475, %v476
    %v478 = vsel %vm133, %v381, 0.0
    %v479 = vrot.slane %v478, 4
    %v480 = vadd.f32 %v478, %v479
    %v481 = vrot.slane %v480, 2
    %v482 = vadd.f32 %v480, %v481
    %v483 = vrot.slane %v482, 1
    %v484 = vadd.f32 %v482, %v483
    %v485 = vsel %vm133, %v382, 0.0
    %v486 = vrot.slane %v485, 4
    %v487 = vadd.f32 %v485, %v486
    %v488 = vrot.slane %v487, 2
    %v489 = vadd.f32 %v487, %v488
    %v490 = vrot.slane %v489, 1
    %v491 = vadd.f32 %v489, %v490
    %v492 = vsel %vm133, %v385, 0.0
    %v493 = vrot.slane %v492, 4
    %v494 = vadd.f32 %v492, %v493
    %v495 = vrot.slane %v494, 2
    %v496 = vadd.f32 %v494, %v495
    %v497 = vrot.slane %v496, 1
    %v498 = vadd.f32 %v496, %v497
    %v499 = vsel %vm133, %v386, 0.0
    %v500 = vrot.slane %v499, 4
    %v501 = vadd.f32 %v499, %v500
    %v502 = vrot.slane %v501, 2
    %v503 = vadd.f32 %v501, %v502
    %v504 = vrot.slane %v503, 1
    %v505 = vadd.f32 %v503, %v504
    %v506 = vsel %vm133, %v387, 0.0
    %v507 = vrot.slane %v506, 4
    %v508 = vadd.f32 %v506, %v507
    %v509 = vrot.slane %v508, 2
    %v510 = vadd.f32 %v508, %v509
    %v511 = vrot.slane %v510, 1
    %v512 = vadd.f32 %v510, %v511
    %v513 = vsel %vm133, %v388, 0.0
    %v514 = vrot.slane %v513, 4
    %v515 = vadd.f32 %v513, %v514
    %v516 = vrot.slane %v515, 2
    %v517 = vadd.f32 %v515, %v516
    %v518 = vrot.slane %v517, 1
    %v519 = vadd.f32 %v517, %v518
    %v520 = vsel %vm133, %v389, 0.0
    %v521 = vrot.slane %v520, 4
    %v522 = vadd.f32 %v520, %v521
    %v523 = vrot.slane %v522, 2
    %v524 = vadd.f32 %v522, %v523
    %v525 = vrot.slane %v524, 1
    %v526 = vadd.f32 %v524, %v525
    %v527 = vsel %vm133, %v390, 0.0
    %v528 = vrot.slane %v527, 4
    %v529 = vadd.f32 %v527, %v528
    %v530 = vrot.slane %v529, 2
    %v531 = vadd.f32 %v529, %v530
    %v532 = vrot.slane %v531, 1
    %v533 = vadd.f32 %v531, %v532
    %v534 = vsel %vm133, %v391, 0.0
    %v535 = vrot.slane %v534, 4
    %v536 = vadd.f32 %v534, %v535
    %v537 = vrot.slane %v536, 2
    %v538 = vadd.f32 %v536, %v537
    %v539 = vrot.slane %v538, 1
    %v540 = vadd.f32 %v538, %v539
    %v541 = vsel %vm133, %v392, 0.0
    %v542 = vrot.slane %v541, 4
    %v543 = vadd.f32 %v541, %v542
    %v544 = vrot.slane %v543, 2
    %v545 = vadd.f32 %v543, %v544
    %v546 = vrot.slane %v545, 1
    %v547 = vadd.f32 %v545, %v546
    %v548 = vsel %vm133, %v395, 0.0
    %v549 = vrot.slane %v548, 4
    %v550 = vadd.f32 %v548, %v549
    %v551 = vrot.slane %v550, 2
    %v552 = vadd.f32 %v550, %v551
    %v553 = vrot.slane %v552, 1
    %v554 = vadd.f32 %v552, %v553
    %v555 = vsel %vm133, %v396, 0.0
    %v556 = vrot.slane %v555, 4
    %v557 = vadd.f32 %v555, %v556
    %v558 = vrot.slane %v557, 2
    %v559 = vadd.f32 %v557, %v558
    %v560 = vrot.slane %v559, 1
    %v561 = vadd.f32 %v559, %v560
    %v562 = vsel %vm133, %v397, 0.0
    %v563 = vrot.slane %v562, 4
    %v564 = vadd.f32 %v562, %v563
    %v565 = vrot.slane %v564, 2
    %v566 = vadd.f32 %v564, %v565
    %v567 = vrot.slane %v566, 1
    %v568 = vadd.f32 %v566, %v567
    %v569 = vsel %vm133, %v398, 0.0
    %v570 = vrot.slane %v569, 4
    %v571 = vadd.f32 %v569, %v570
    %v572 = vrot.slane %v571, 2
    %v573 = vadd.f32 %v571, %v572
    %v574 = vrot.slane %v573, 1
    %v575 = vadd.f32 %v573, %v574
    %v576 = vsel %vm133, %v399, 0.0
    %v577 = vrot.slane %v576, 4
    %v578 = vadd.f32 %v576, %v577
    %v579 = vrot.slane %v578, 2
    %v580 = vadd.f32 %v578, %v579
    %v581 = vrot.slane %v580, 1
    %v582 = vadd.f32 %v580, %v581
    %v583 = vsel %vm133, %v400, 0.0
    %v584 = vrot.slane %v583, 4
    %v585 = vadd.f32 %v583, %v584
    %v586 = vrot.slane %v585, 2
    %v587 = vadd.f32 %v585, %v586
    %v588 = vrot.slane %v587, 1
    %v589 = vadd.f32 %v587, %v588
    %v590 = vsel %vm133, %v401, 0.0
    %v591 = vrot.slane %v590, 4
    %v592 = vadd.f32 %v590, %v591
    %v593 = vrot.slane %v592, 2
    %v594 = vadd.f32 %v592, %v593
    %v595 = vrot.slane %v594, 1
    %v596 = vadd.f32 %v594, %v595
    %v597 = vsel %vm133, %v402, 0.0
    %v598 = vrot.slane %v597, 4
    %v599 = vadd.f32 %v597, %v598
    %v600 = vrot.slane %v599, 2
    %v601 = vadd.f32 %v599, %v600
    %v602 = vrot.slane %v601, 1
    %v603 = vadd.f32 %v601, %v602
    %v604 = vsel %vm133, %v404, 0.0
    %v605 = vrot.slane %v604, 4
    %v606 = vadd.f32 %v604, %v605
    %v607 = vrot.slane %v606, 2
    %v608 = vadd.f32 %v606, %v607
    %v609 = vrot.slane %v608, 1
    %v610 = vadd.f32 %v608, %v609
    %v611 = vsel %vm133, %v405, 0.0
    %v612 = vrot.slane %v611, 4
    %v613 = vadd.f32 %v611, %v612
    %v614 = vrot.slane %v613, 2
    %v615 = vadd.f32 %v613, %v614
    %v616 = vrot.slane %v615, 1
    %v617 = vadd.f32 %v615, %v616
    %v618 = vsel %vm133, %v406, 0.0
    %v619 = vrot.slane %v618, 4
    %v620 = vadd.f32 %v618, %v619
    %v621 = vrot.slane %v620, 2
    %v622 = vadd.f32 %v620, %v621
    %v623 = vrot.slane %v622, 1
    %v624 = vadd.f32 %v622, %v623
    %v625 = vsel %vm133, %v407, 0.0
    %v626 = vrot.slane %v625, 4
    %v627 = vadd.f32 %v625, %v626
    %v628 = vrot.slane %v627, 2
    %v629 = vadd.f32 %v627, %v628
    %v630 = vrot.slane %v629, 1
    %v631 = vadd.f32 %v629, %v630
    %v660 = vrot.slane %v331, 7
    %v661 = vrot.slane %v332, 6
    %v662 = vrot.slane %v333, 5
    %v663 = vrot.slane %v334, 4
    %v664 = vrot.slane %v335, 3
    %v665 = vrot.slane %v336, 2
    %v666 = vrot.slane %v337, 1
    %v667 = vrot.slane %v339, 7
    %v668 = vrot.slane %v340, 6
    %v669 = vrot.slane %v341, 5
    %v670 = vrot.slane %v342, 4
    %v671 = vrot.slane %v343, 3
    %v672 = vrot.slane %v344, 2
    %v673 = vrot.slane %v345, 1
    %v674 = vrot.slane %v347, 7
    %v675 = vrot.slane %v348, 6
    %v676 = vrot.slane %v349, 5
    %v677 = vrot.slane %v350, 4
    %v678 = vrot.slane %v351, 3
    %v679 = vrot.slane %v352, 2
    %v680 = vrot.slane %v353, 1
    %v681 = vrot.slane %v355, 7
    %v682 = vrot.slane %v356, 6
    %v683 = vrot.slane %v357, 5
    %vm684 = vcmask 1040384
    %v685 = vsel %vm684, %v330, %v660
    %vm686 = vcmask 1042434
    %v687 = vsel %vm686, %v661, %v662
    %v688 = vsel %vm133, %v685, %v687
    %vm689 = vcmask 1044484
    %v690 = vsel %vm689, %v663, %v664
    %vm691 = vcmask 1046534
    %v692 = vsel %vm691, %v665, %v666
    %vm693 = vcmask 1045508
    %v694 = vsel %vm693, %v690, %v692
    %vm695 = vcmask 1043456
    %v696 = vsel %vm695, %v688, %v694
    %v697 = vsel %vm684, %v338, %v667
    %v698 = vsel %vm686, %v668, %v669
    %v699 = vsel %vm133, %v697, %v698
    %v700 = vsel %vm689, %v670, %v671
    %v701 = vsel %vm691, %v672, %v673
    %v702 = vsel %vm693, %v700, %v701
    %v703 = vsel %vm695, %v699, %v702
    %v704 = vsel %vm684, %v346, %v674
    %v705 = vsel %vm686, %v675, %v676
    %v706 = vsel %vm133, %v704, %v705
    %v707 = vsel %vm689, %v677, %v678
    %v708 = vsel %vm691, %v679, %v680
    %v709 = vsel %vm693, %v707, %v708
    %v710 = vsel %vm695, %v706, %v709
    %v711 = vsel %vm684, %v354, %v681
    %v712 = vsel %vm686, %v682, %v683
    %v713 = vsel %vm133, %v711, %v712
    %718 = vst [vmem:[#allocation7] sm:$0xff] %v696
    %719 = vst [vmem:[#allocation7 + $0x8] sm:$0xff] %v703
    %720 = vst [vmem:[#allocation7 + $0x10] sm:$0xff] %v710
    %v721 = vlaneseq
    %vm722 = vcmp.ge.s32.totalorder %v721, 0
    %vm723 = vcmp.lt.s32.totalorder %v721, 512
    %vm724 = vmand %vm722, %vm723
    %725 = vst.msk [vmem:[#allocation7 + $0x18] sm:$0xf] %vm724, %v713
    %v726 = vld [vmem:[%s4] sm:$0xff]
    %v727 = vld [vmem:[%s4 + $0x8] sm:$0xff]
    %v728 = vld [vmem:[%s4 + $0x10] sm:$0xff]
    %v729 = vld [vmem:[%s4 + $0x18] sm:$0xf]
    %v730 = vadd.f32 %v726, %v696
    %v731 = vadd.f32 %v727, %v703
    %v732 = vadd.f32 %v728, %v710
    %v733 = vadd.f32 %v729, %v713
    %v734 = vld [vmem:[#allocation4] sm:$0xff]
    %v735 = vld [vmem:[#allocation4 + $0x8] sm:$0xff]
    %v736 = vld [vmem:[#allocation4 + $0x10] sm:$0xff]
    %v737 = vld [vmem:[#allocation4 + $0x18] sm:$0xf]
    %v738 = vsub.f32 %v730, %v734
    %v739 = vsub.f32 %v731, %v735
    %v740 = vsub.f32 %v732, %v736
    %v741 = vsub.f32 %v733, %v737
    %742 = vst [vmem:[%s6] ss:$2 sm:$0xff] %v738
    %s743 = scalar_lea.vmem %s6, 16
    %744 = vst [vmem:[%s743] ss:$2 sm:$0xff] %v739
    %s745 = scalar_lea.vmem %s6, 32
    %746 = vst [vmem:[%s745] ss:$2 sm:$0xff] %v740
    %s747 = scalar_lea.vmem %s6, 48
    %748 = vst.msk [vmem:[%s747] ss:$2 sm:$0xf] %vm724, %v741
    %v777 = vrot.slane %v449, 7
    %v778 = vrot.slane %v456, 6
    %v779 = vrot.slane %v463, 5
    %v780 = vrot.slane %v470, 4
    %v781 = vrot.slane %v477, 3
    %v782 = vrot.slane %v484, 2
    %v783 = vrot.slane %v491, 1
    %v784 = vrot.slane %v505, 7
    %v785 = vrot.slane %v512, 6
    %v786 = vrot.slane %v519, 5
    %v787 = vrot.slane %v526, 4
    %v788 = vrot.slane %v533, 3
    %v789 = vrot.slane %v540, 2
    %v790 = vrot.slane %v547, 1
    %v791 = vrot.slane %v561, 7
    %v792 = vrot.slane %v568, 6
    %v793 = vrot.slane %v575, 5
    %v794 = vrot.slane %v582, 4
    %v795 = vrot.slane %v589, 3
    %v796 = vrot.slane %v596, 2
    %v797 = vrot.slane %v603, 1
    %v798 = vrot.slane %v617, 7
    %v799 = vrot.slane %v624, 6
    %v800 = vrot.slane %v631, 5
    %v801 = vsel %vm684, %v442, %v777
    %v802 = vsel %vm686, %v778, %v779
    %v803 = vsel %vm133, %v801, %v802
    %v804 = vsel %vm689, %v780, %v781
    %v805 = vsel %vm691, %v782, %v783
    %v806 = vsel %vm693, %v804, %v805
    %v807 = vsel %vm695, %v803, %v806
    %v808 = vsel %vm684, %v498, %v784
    %v809 = vsel %vm686, %v785, %v786
    %v810 = vsel %vm133, %v808, %v809
    %v811 = vsel %vm689, %v787, %v788
    %v812 = vsel %vm691, %v789, %v790
    %v813 = vsel %vm693, %v811, %v812
    %v814 = vsel %vm695, %v810, %v813
    %v815 = vsel %vm684, %v554, %v791
    %v816 = vsel %vm686, %v792, %v793
    %v817 = vsel %vm133, %v815, %v816
    %v818 = vsel %vm689, %v794, %v795
    %v819 = vsel %vm691, %v796, %v797
    %v820 = vsel %vm693, %v818, %v819
    %v821 = vsel %vm695, %v817, %v820
    %v822 = vsel %vm684, %v610, %v798
    %v823 = vsel %vm686, %v799, %v800
    %v824 = vsel %vm133, %v822, %v823
    %s829 = scalar_lea.vmem %s6, 1
    %830 = vst [vmem:[%s829] ss:$2 sm:$0xff] %v807
    %s831 = scalar_lea.vmem %s6, 17
    %832 = vst [vmem:[%s831] ss:$2 sm:$0xff] %v814
    %s833 = scalar_lea.vmem %s6, 33
    %834 = vst [vmem:[%s833] ss:$2 sm:$0xff] %v821
    %s835 = scalar_lea.vmem %s6, 49
    %836 = vst.msk [vmem:[%s835] ss:$2 sm:$0xf] %vm724, %v824
    // Predicated region
    $region22: #{_psp_forward.1} parent=1 // pred_check
      _
    $region23: #{_psp_forward.1} parent=1 // pred_check_branch
      %838 = sbr.rel (0) target = $region25
    $region24: #{_psp_forward.1} parent=1 // pred_region
      %s839 = sld [smem:[#allocation3]]
      %841 = vsyncadd [#allocation6], 0
      %s842 = smul.addr %s839, 28
      %s843 = scalar_lea.hbm %s5, %s842
      %s845 = sshll.u32 [#allocation7], 4
      %s846 = int_to_ptr.vmem [resolvable:$true] %s845
      %s847 = sshll.u32 %s843, 4
      %s848 = int_to_ptr.hbm [resolvable:$true] %s847
      %850 = dma.vmem_to_hbm [thread:$0]  %s846, 448, %s848, [#allocation6]
    $region25: #{_psp_forward.1} parent=1 // pred_fallthru
      _
    // Predicated region
    $region26: #{_psp_forward.1} parent=1 // pred_check
      _
    $region27: #{_psp_forward.1} parent=1 // pred_check_branch
      %852 = sbr.rel (0) target = $region29
    $region28: #{_psp_forward.1} parent=1 // pred_region
      _
    $region29: #{_psp_forward.1} parent=1 // pred_fallthru
      _
    // Predicated region
    $region30: #{_psp_forward.1} parent=1 // pred_check
      _
    $region31: #{_psp_forward.1} parent=1 // pred_check_branch
      %854 = sbr.rel (0) target = $region33
    $region32: #{_psp_forward.1} parent=1 // pred_region
      %856 = dma.done [#allocation6], 448
    $region33: #{_psp_forward.1} parent=1 // pred_fallthru
      _
    // Predicated region
    $region34: #{_psp_forward.1} parent=1 // pred_check
      _
    $region35: #{_psp_forward.1} parent=1 // pred_check_branch
      %858 = sbr.rel (0) target = $region37
    $region36: #{_psp_forward.1} parent=1 // pred_region
      _
    $region37: #{_psp_forward.1} parent=1 // pred_fallthru
      _
    %859 = vsyncpa [#allocation5], 1
    %860 = vsyncpa [#allocation6], 1

</llo_original>
